<compile_context>
chip_gen: v6e
topology: v6e:2x2x1
jax: 0.10.0
libtpu: 0.0.40
codegen_flags: <defaults>
</compile_context>

<pallas_src>
import functools

import jax
import jax.numpy as jnp
from jax.experimental import pallas as pl
from jax.experimental.pallas import tpu as pltpu

HIDDEN = 256
NUM_CLASSES = 10
CLASS_PAD = 128          # lane-dense output width


def _mlp_kernel(x_ref, w1_ref, b1_ref, w2_ref, b2_ref, o_ref):
    # ---- hidden = sigmoid(x @ W1 + b1) -------------------------------------
    # bf16 MXU operands, f32 accumulation (v5e has no bf16 VPU/EUP).
    x_bf = x_ref[...].astype(jnp.bfloat16)
    h = jnp.dot(x_bf, w1_ref[...], preferred_element_type=jnp.float32)
    h = h + b1_ref[...]                                   # [TB, 256] + [1, 256]
    # sigmoid(h) = 0.5 * tanh(0.5 * h) + 0.5  -> single EUP push, no exp+vrcp.
    h = 0.5 * jnp.tanh(0.5 * h) + 0.5                     # f32

    # ---- logits = hidden @ W2_pad + b2_pad ---------------------------------
    # W2 is zero-padded to 128 classes; b2 padded lanes hold -1e30 so the
    # padded classes vanish under softmax (exp underflows to 0).
    logits = jnp.dot(h.astype(jnp.bfloat16), w2_ref[...],
                     preferred_element_type=jnp.float32)  # [TB, 128]
    logits = logits + b2_ref[...]                         # [TB, 128] + [1, 128]

    # ---- softmax over the (padded) class axis ------------------------------
    m = jnp.max(logits, axis=-1, keepdims=True)
    e = jnp.exp(logits - m)
    s = jnp.sum(e, axis=-1, keepdims=True)
    # Exact divide: denominator is only [TB, 1] values, so this is free and
    # keeps row sums == 1 to f32 precision.
    o_ref[...] = (e / s).astype(o_ref.dtype)


def _round_up(n, m):
    return (n + m - 1) // m * m


def _default_tb(B):
    """Pick a batch tile: large (amortize per-step overhead), multiple of 8,
    and >=2 grid steps when B permits so v7x's two TensorCores both get work."""
    if B < 16:
        return B                                   # single full-batch tile
    return min(1024, _round_up(pl.cdiv(B, 2), 8))


@functools.partial(jax.jit, static_argnames=("tb", "out_dtype"))
def network_forward(x, w1, b1, w2, b2, *, tb=None, out_dtype=jnp.float32):
    """x: [B, 784] f32 or bf16; w1: [784, 256]; b1: [1, 256]; w2: [256, 10]; b2: [1, 10]."""
    B, K = x.shape
    assert w1.shape == (K, HIDDEN) and w2.shape == (HIDDEN, NUM_CLASSES)

    if tb is None:
        tb = _default_tb(B)
    num_tiles = pl.cdiv(B, tb)      # ragged last block handled by Pallas; no x pad copy

    # --- wrapper-side weight prep (tiny; x is passed through untouched) -----
    w1_bf = w1.astype(jnp.bfloat16)                                   # ~400 KB resident
    w2_bf = jnp.pad(w2, ((0, 0), (0, CLASS_PAD - NUM_CLASSES))).astype(jnp.bfloat16)
    b1_f32 = b1.astype(jnp.float32)
    b2_pd = jnp.pad(b2.astype(jnp.float32),
                    ((0, 0), (0, CLASS_PAD - NUM_CLASSES)),
                    constant_values=-1e30)                            # f32 [1, 128]

    out_itemsize = jnp.dtype(out_dtype).itemsize
    cost = pl.CostEstimate(
        flops=2 * B * K * HIDDEN + 2 * B * HIDDEN * CLASS_PAD,
        transcendentals=B * (HIDDEN + CLASS_PAD),
        bytes_accessed=(x.size * x.dtype.itemsize
                        + w1_bf.size * 2 + w2_bf.size * 2
                        + b1_f32.size * 4 + b2_pd.size * 4
                        + B * CLASS_PAD * out_itemsize),
    )

    out_padded = pl.pallas_call(
        _mlp_kernel,
        out_shape=jax.ShapeDtypeStruct((B, CLASS_PAD), out_dtype),
        grid=(num_tiles,),
        in_specs=[
            pl.BlockSpec((tb, K), lambda i: (i, 0)),              # x tile (pipelined)
            pl.BlockSpec((K, HIDDEN), lambda i: (0, 0)),          # W1 resident
            pl.BlockSpec((1, HIDDEN), lambda i: (0, 0)),          # b1 resident
            pl.BlockSpec((HIDDEN, CLASS_PAD), lambda i: (0, 0)),  # W2 resident
            pl.BlockSpec((1, CLASS_PAD), lambda i: (0, 0)),       # b2 resident
        ],
        out_specs=pl.BlockSpec((tb, CLASS_PAD), lambda i: (i, 0)),
        compiler_params=pltpu.CompilerParams(
            dimension_semantics=("parallel",),
            vmem_limit_bytes=32 * 1024 * 1024,
        ),
        cost_estimate=cost,
    )(x, w1_bf, b1_f32, w2_bf, b2_pd)

    return out_padded[:, :NUM_CLASSES]


def init_params(key):
    """Deterministic init mimicking PyTorch nn.Linear's U(-1/sqrt(fan_in), 1/sqrt(fan_in))."""
    k1, k2, k3, k4 = jax.random.split(key, 4)
    bound1 = 1.0 / jnp.sqrt(784.0)
    bound2 = 1.0 / jnp.sqrt(256.0)
    w1 = jax.random.uniform(k1, (784, 256), jnp.float32, -bound1, bound1)
    b1 = jax.random.uniform(k2, (1, 256), jnp.float32, -bound1, bound1)
    w2 = jax.random.uniform(k3, (256, 10), jnp.float32, -bound2, bound2)
    b2 = jax.random.uniform(k4, (1, 10), jnp.float32, -bound2, bound2)
    return w1, b1, w2, b2


def _reference(x, w1, b1, w2, b2):
    h = jax.nn.sigmoid(x @ w1 + b1)
    return jax.nn.softmax(h @ w2 + b2, axis=1)


if __name__ == "__main__":
    key = jax.random.PRNGKey(0)
    kx, kp = jax.random.split(key)

    B = 2
    x = jax.random.normal(kx, (B, 784), jnp.float32)
    w1, b1, w2, b2 = init_params(kp)

    out = network_forward(x, w1, b1, w2, b2)
    out = jax.block_until_ready(out)

    ref = _reference(x, w1, b1, w2, b2)
    assert out.shape == (B, 10)
    # bf16 MXU operands -> loosened tolerance vs the f32 reference.
    assert jnp.allclose(out, ref, atol=2e-2, rtol=0.0), (
        f"max abs err {jnp.max(jnp.abs(out - ref))}")
    # exact softmax normalization: rows sum to 1 to f32 precision.
    assert jnp.allclose(jnp.sum(out, axis=1), jnp.ones((B,)), atol=1e-4)

    print("KERNEL_OK")
</pallas_src>

<mosaic_0001>
module attributes {stable_mosaic.version = 11 : i64} {
  func.func @_mlp_kernel(%arg0: i32, %arg1: memref<2x784xf32, #tpu.memory_space<vmem>>, %arg2: memref<784x256xbf16, #tpu.memory_space<vmem>>, %arg3: memref<1x256xf32, #tpu.memory_space<vmem>>, %arg4: memref<256x128xbf16, #tpu.memory_space<vmem>>, %arg5: memref<1x128xf32, #tpu.memory_space<vmem>>, %arg6: memref<2x128xf32, #tpu.memory_space<vmem>>) attributes {dimension_semantics = [#tpu.dimension_semantics<parallel>], iteration_bounds = array<i64: 1>, scalar_prefetch = 0 : i64, scratch_operands = 0 : i64, tpu.core_type = #tpu.core_type<tc>, window_params = [{transform_indices = @transform_0, window_bounds = array<i64: 2, 784>}, {pipeline_mode = #tpu.pipeline_mode<synchronous>, transform_indices = @transform_1, window_bounds = array<i64: 784, 256>}, {pipeline_mode = #tpu.pipeline_mode<synchronous>, transform_indices = @transform_2, window_bounds = array<i64: 1, 256>}, {pipeline_mode = #tpu.pipeline_mode<synchronous>, transform_indices = @transform_3, window_bounds = array<i64: 256, 128>}, {pipeline_mode = #tpu.pipeline_mode<synchronous>, transform_indices = @transform_4, window_bounds = array<i64: 1, 128>}, {transform_indices = @transform_5, window_bounds = array<i64: 2, 128>}]} {
    %c0 = arith.constant 0 : index
    %c0_0 = arith.constant 0 : index
    %0 = vector.load %arg1[%c0, %c0_0] : memref<2x784xf32, #tpu.memory_space<vmem>>, vector<2x784xf32>
    %1 = arith.truncf %0 : vector<2x784xf32> to vector<2x784xbf16>
    %c0_1 = arith.constant 0 : index
    %c0_2 = arith.constant 0 : index
    %2 = vector.load %arg2[%c0_1, %c0_2] : memref<784x256xbf16, #tpu.memory_space<vmem>>, vector<784x256xbf16>
    %cst = arith.constant dense<0.000000e+00> : vector<2x256xf32>
    %3 = tpu.matmul %1, %2, %cst {dimension_numbers = #tpu.dot_dimension_numbers<[1], [0], [0], [1], [0, 0, 1, 1], [], []>} : vector<2x784xbf16>, vector<784x256xbf16>, vector<2x256xf32> -> vector<2x256xf32>
    %c0_3 = arith.constant 0 : index
    %c0_4 = arith.constant 0 : index
    %4 = vector.load %arg3[%c0_3, %c0_4] : memref<1x256xf32, #tpu.memory_space<vmem>>, vector<1x256xf32>
    %5 = vector.broadcast %4 : vector<1x256xf32> to vector<2x256xf32>
    %6 = arith.addf %3, %5 : vector<2x256xf32>
    %cst_5 = arith.constant 5.000000e-01 : f32
    %7 = vector.broadcast %cst_5 : f32 to vector<2x256xf32>
    %8 = arith.mulf %7, %6 : vector<2x256xf32>
    %9 = math.tanh %8 : vector<2x256xf32>
    %cst_6 = arith.constant 5.000000e-01 : f32
    %10 = vector.broadcast %cst_6 : f32 to vector<2x256xf32>
    %11 = arith.mulf %10, %9 : vector<2x256xf32>
    %cst_7 = arith.constant 5.000000e-01 : f32
    %12 = vector.broadcast %cst_7 : f32 to vector<2x256xf32>
    %13 = arith.addf %11, %12 : vector<2x256xf32>
    %14 = arith.truncf %13 : vector<2x256xf32> to vector<2x256xbf16>
    %c0_8 = arith.constant 0 : index
    %c0_9 = arith.constant 0 : index
    %15 = vector.load %arg4[%c0_8, %c0_9] : memref<256x128xbf16, #tpu.memory_space<vmem>>, vector<256x128xbf16>
    %cst_10 = arith.constant dense<0.000000e+00> : vector<2x128xf32>
    %16 = tpu.matmul %14, %15, %cst_10 {dimension_numbers = #tpu.dot_dimension_numbers<[1], [0], [0], [1], [0, 0, 1, 1], [], []>} : vector<2x256xbf16>, vector<256x128xbf16>, vector<2x128xf32> -> vector<2x128xf32>
    %c0_11 = arith.constant 0 : index
    %c0_12 = arith.constant 0 : index
    %17 = vector.load %arg5[%c0_11, %c0_12] : memref<1x128xf32, #tpu.memory_space<vmem>>, vector<1x128xf32>
    %18 = vector.broadcast %17 : vector<1x128xf32> to vector<2x128xf32>
    %19 = arith.addf %16, %18 : vector<2x128xf32>
    %cst_13 = arith.constant dense<0xFF800000> : vector<2xf32>
    %20 = vector.multi_reduction <maximumf>, %19, %cst_13 [1] : vector<2x128xf32> to vector<2xf32>
    %21 = vector.shape_cast %20 : vector<2xf32> to vector<2x1xf32>
    %22 = vector.broadcast %21 : vector<2x1xf32> to vector<2x128xf32>
    %23 = arith.subf %19, %22 : vector<2x128xf32>
    %24 = math.exp %23 : vector<2x128xf32>
    %cst_14 = arith.constant dense<0.000000e+00> : vector<2xf32>
    %25 = vector.multi_reduction <add>, %24, %cst_14 [1] : vector<2x128xf32> to vector<2xf32>
    %26 = vector.shape_cast %25 : vector<2xf32> to vector<2x1xf32>
    %27 = vector.broadcast %26 : vector<2x1xf32> to vector<2x128xf32>
    %28 = arith.divf %24, %27 : vector<2x128xf32>
    %c0_15 = arith.constant 0 : index
    %c0_16 = arith.constant 0 : index
    %29 = vector.load %arg6[%c0_15, %c0_16] : memref<2x128xf32, #tpu.memory_space<vmem>>, vector<2x128xf32>
    tpu.vector_store %arg6[%c0_15, %c0_16], %28 {strides = array<i32>} : memref<2x128xf32, #tpu.memory_space<vmem>>, vector<2x128xf32>,
    return
  }
  func.func @transform_0(%arg0: i32) -> (i32, i32) {
    %c0_i32 = arith.constant 0 : i32
    %c0_i32_0 = arith.constant 0 : i32
    return %arg0, %c0_i32 : i32, i32
  }
  func.func @transform_1(%arg0: i32) -> (i32, i32) {
    %c0_i32 = arith.constant 0 : i32
    %c0_i32_0 = arith.constant 0 : i32
    %c0_i32_1 = arith.constant 0 : i32
    return %c0_i32, %c0_i32_0 : i32, i32
  }
  func.func @transform_2(%arg0: i32) -> (i32, i32) {
    %c0_i32 = arith.constant 0 : i32
    %c0_i32_0 = arith.constant 0 : i32
    %c0_i32_1 = arith.constant 0 : i32
    return %c0_i32, %c0_i32_0 : i32, i32
  }
  func.func @transform_3(%arg0: i32) -> (i32, i32) {
    %c0_i32 = arith.constant 0 : i32
    %c0_i32_0 = arith.constant 0 : i32
    %c0_i32_1 = arith.constant 0 : i32
    return %c0_i32, %c0_i32_0 : i32, i32
  }
  func.func @transform_4(%arg0: i32) -> (i32, i32) {
    %c0_i32 = arith.constant 0 : i32
    %c0_i32_0 = arith.constant 0 : i32
    %c0_i32_1 = arith.constant 0 : i32
    return %c0_i32, %c0_i32_0 : i32, i32
  }
  func.func @transform_5(%arg0: i32) -> (i32, i32) {
    %c0_i32 = arith.constant 0 : i32
    %c0_i32_0 = arith.constant 0 : i32
    return %arg0, %c0_i32 : i32, i32
  }
}

</mosaic_0001>

<llo_original>
// kernel: network_forward.1
$region0: #{network_forward.1}
  #allocation0 [shape = 'u32[]', space=smem, size = 0x4, offset = 0x4, fixed_abs, tag = 'smem constant byte address 0x4 - core index']
  #allocation1 [shape = 'u32[144,128]{1,0:T(1,128)}', space=vmem, size = 0x12000, scoped, tag = 'internal scratch']
  %s0 = inlined_call_operand.vmem [shape: f32[2,784], index: 0, kind: input, shape index: {}]
  %s1 = inlined_call_operand.vmem [shape: bf16[784,256], index: 1, kind: input, shape index: {}]
  %s2 = inlined_call_operand.vmem [shape: f32[1,256], index: 2, kind: input, shape index: {}]
  %s3 = inlined_call_operand.vmem [shape: bf16[256,128], index: 3, kind: input, shape index: {}]
  %s4 = inlined_call_operand.vmem [shape: f32[1,128], index: 4, kind: input, shape index: {}]
  %s5 = inlined_call_operand.hbm [shape: f32[2,128], index: 5, kind: output, shape index: {}]
  %s6 = sld [smem:[#allocation0]]
  $region30: #{network_forward.1} parent=0
    _
  %s8 = ssub.s32 1, %s6
  %s9 = scalar_select 0, %s8, %s6
  $region1: #{network_forward.1} parent=0
    #allocation2 [shape = 'u8[1024]{0}', space=vmem, size = 0x400, scoped, tag = 'output window, operand 0, single buffered']
    #allocation3 [shape = 's32[1]{0}', space=sflag, size = 0x4, scoped, tag = 'scoped memory for network_forward.1']
    %10 = vsyncpa [#allocation3], 0
    // Predicated region
    $region2: #{network_forward.1} parent=1 // pred_check
      _
    $region3: #{network_forward.1} parent=1 // pred_check_branch
      %12 = sbr.rel (0) target = $region5
    $region4: #{network_forward.1} parent=1 // pred_region
      _
    $region5: #{network_forward.1} parent=1 // pred_fallthru
      _
    // Predicated region
    $region6: #{network_forward.1} parent=1 // pred_check
      _
    $region7: #{network_forward.1} parent=1 // pred_check_branch
      %14 = sbr.rel (0) target = $region9
    $region8: #{network_forward.1} parent=1 // pred_region
      _
    $region9: #{network_forward.1} parent=1 // pred_fallthru
      _
    // Predicated region
    $region10: #{network_forward.1} parent=1 // pred_check
      _
    $region11: #{network_forward.1} parent=1 // pred_check_branch
      %16 = sbr.rel (0) target = $region13
    $region12: #{network_forward.1} parent=1 // pred_region
      _
    $region13: #{network_forward.1} parent=1 // pred_fallthru
      _
    // Predicated region
    $region14: #{network_forward.1} parent=1 // pred_check
      _
    $region15: #{network_forward.1} parent=1 // pred_check_branch
      %18 = sbr.rel (0) target = $region17
    $region16: #{network_forward.1} parent=1 // pred_region
      _
    $region17: #{network_forward.1} parent=1 // pred_fallthru
      _
    // Predicated region
    $region18: #{network_forward.1} parent=1 // pred_check
      _
    $region19: #{network_forward.1} parent=1 // pred_check_branch
      %20 = sbr.rel (0) target = $region21
    $region20: #{network_forward.1} parent=1 // pred_region
      _
    $region21: #{network_forward.1} parent=1 // pred_fallthru
      _
    %v22 = vld [vmem:[%s0] sm:$0xff]
    %v23 = vld [vmem:[%s0 + $0x8] sm:$0x3f]
    %v26 = vcombine.high %v22, %v22
    %v28 = vunpack.c.l.s4 1983009808
    %v29 = vunpack.c.0.s8 %v28
    %v30 = vlaneseq
    %v31 = vshrl.u32 %v30, 7
    %v32 = vsub.s32 %v29, %v31
    %v33 = vrot.slane %v22, %v32
    %v35 = vunpack.c.l.s4 1983009808
    %v36 = vunpack.c.0.s8 %v35
    %v37 = vlaneseq
    %v38 = vshrl.u32 %v37, 7
    %v39 = vsub.s32 %v36, %v38
    %v40 = vrot.slane %v26, %v39
    %v41 = vcombine.high %v33, %v33
    %v42 = vcombine.high %v40, %v40
    %v43 = vcombine.high %v23, %v23
    %v45 = vunpack.c.l.s4 1983009808
    %v46 = vunpack.c.0.s8 %v45
    %v47 = vlaneseq
    %v48 = vshrl.u32 %v47, 7
    %v49 = vsub.s32 %v46, %v48
    %v50 = vrot.slane %v23, %v49
    %v52 = vunpack.c.l.s4 1983009808
    %v53 = vunpack.c.0.s8 %v52
    %v54 = vlaneseq
    %v55 = vshrl.u32 %v54, 7
    %v56 = vsub.s32 %v53, %v55
    %v57 = vrot.slane %v43, %v56
    %v58 = vcombine.high %v50, %v50
    %v66 = vpack.c.bf16 %v33, %v33
    %v67 = vpack.c.bf16 %v41, %v41
    %v68 = vpack.c.bf16 %v40, %v40
    %v69 = vpack.c.bf16 %v42, %v42
    %v70 = vpack.c.bf16 %v50, %v50
    %v71 = vpack.c.bf16 %v58, %v58
    %v72 = vpack.c.bf16 %v57, %v57
    %v73 = vld [vmem:[%s1] sm:$0xff]
    %v74 = vld [vmem:[%s1 + $0x8] sm:$0xff]
    %v75 = vld [vmem:[%s1 + $0x10] sm:$0xff]
    %v76 = vld [vmem:[%s1 + $0x18] sm:$0xff]
    %v77 = vld [vmem:[%s1 + $0x20] sm:$0xff]
    %v78 = vld [vmem:[%s1 + $0x28] sm:$0xff]
    %v79 = vld [vmem:[%s1 + $0x30] sm:$0xff]
    %v80 = vld [vmem:[%s1 + $0x38] sm:$0xff]
    %v81 = vld [vmem:[%s1 + $0x40] sm:$0xff]
    %v82 = vld [vmem:[%s1 + $0x48] sm:$0xff]
    %v83 = vld [vmem:[%s1 + $0x50] sm:$0xff]
    %v84 = vld [vmem:[%s1 + $0x58] sm:$0xff]
    %v85 = vld [vmem:[%s1 + $0x60] sm:$0xff]
    %v86 = vld [vmem:[%s1 + $0x68] sm:$0xff]
    %v87 = vld [vmem:[%s1 + $0x70] sm:$0xff]
    %v88 = vld [vmem:[%s1 + $0x78] sm:$0xff]
    %v89 = vld [vmem:[%s1 + $0x80] sm:$0xff]
    %v90 = vld [vmem:[%s1 + $0x88] sm:$0xff]
    %v91 = vld [vmem:[%s1 + $0x90] sm:$0xff]
    %v92 = vld [vmem:[%s1 + $0x98] sm:$0xff]
    %v93 = vld [vmem:[%s1 + $0xa0] sm:$0xff]
    %v94 = vld [vmem:[%s1 + $0xa8] sm:$0xff]
    %v95 = vld [vmem:[%s1 + $0xb0] sm:$0xff]
    %v96 = vld [vmem:[%s1 + $0xb8] sm:$0xff]
    %v97 = vld [vmem:[%s1 + $0xc0] sm:$0xff]
    %v98 = vld [vmem:[%s1 + $0xc8] sm:$0xff]
    %v99 = vld [vmem:[%s1 + $0xd0] sm:$0xff]
    %v100 = vld [vmem:[%s1 + $0xd8] sm:$0xff]
    %v101 = vld [vmem:[%s1 + $0xe0] sm:$0xff]
    %v102 = vld [vmem:[%s1 + $0xe8] sm:$0xff]
    %v103 = vld [vmem:[%s1 + $0xf0] sm:$0xff]
    %v104 = vld [vmem:[%s1 + $0xf8] sm:$0xff]
    %v105 = vld [vmem:[%s1 + $0x100] sm:$0xff]
    %v106 = vld [vmem:[%s1 + $0x108] sm:$0xff]
    %v107 = vld [vmem:[%s1 + $0x110] sm:$0xff]
    %v108 = vld [vmem:[%s1 + $0x118] sm:$0xff]
    %v109 = vld [vmem:[%s1 + $0x120] sm:$0xff]
    %v110 = vld [vmem:[%s1 + $0x128] sm:$0xff]
    %v111 = vld [vmem:[%s1 + $0x130] sm:$0xff]
    %v112 = vld [vmem:[%s1 + $0x138] sm:$0xff]
    %v113 = vld [vmem:[%s1 + $0x140] sm:$0xff]
    %v114 = vld [vmem:[%s1 + $0x148] sm:$0xff]
    %v115 = vld [vmem:[%s1 + $0x150] sm:$0xff]
    %v116 = vld [vmem:[%s1 + $0x158] sm:$0xff]
    %v117 = vld [vmem:[%s1 + $0x160] sm:$0xff]
    %v118 = vld [vmem:[%s1 + $0x168] sm:$0xff]
    %v119 = vld [vmem:[%s1 + $0x170] sm:$0xff]
    %v120 = vld [vmem:[%s1 + $0x178] sm:$0xff]
    %v121 = vld [vmem:[%s1 + $0x180] sm:$0xff]
    %v122 = vld [vmem:[%s1 + $0x188] sm:$0xff]
    %v123 = vld [vmem:[%s1 + $0x190] sm:$0xff]
    %v124 = vld [vmem:[%s1 + $0x198] sm:$0xff]
    %v125 = vld [vmem:[%s1 + $0x1a0] sm:$0xff]
    %v126 = vld [vmem:[%s1 + $0x1a8] sm:$0xff]
    %v127 = vld [vmem:[%s1 + $0x1b0] sm:$0xff]
    %v128 = vld [vmem:[%s1 + $0x1b8] sm:$0xff]
    %v129 = vld [vmem:[%s1 + $0x1c0] sm:$0xff]
    %v130 = vld [vmem:[%s1 + $0x1c8] sm:$0xff]
    %v131 = vld [vmem:[%s1 + $0x1d0] sm:$0xff]
    %v132 = vld [vmem:[%s1 + $0x1d8] sm:$0xff]
    %v133 = vld [vmem:[%s1 + $0x1e0] sm:$0xff]
    %v134 = vld [vmem:[%s1 + $0x1e8] sm:$0xff]
    %v135 = vld [vmem:[%s1 + $0x1f0] sm:$0xff]
    %v136 = vld [vmem:[%s1 + $0x1f8] sm:$0xff]
    %v137 = vld [vmem:[%s1 + $0x200] sm:$0xff]
    %v138 = vld [vmem:[%s1 + $0x208] sm:$0xff]
    %v139 = vld [vmem:[%s1 + $0x210] sm:$0xff]
    %v140 = vld [vmem:[%s1 + $0x218] sm:$0xff]
    %v141 = vld [vmem:[%s1 + $0x220] sm:$0xff]
    %v142 = vld [vmem:[%s1 + $0x228] sm:$0xff]
    %v143 = vld [vmem:[%s1 + $0x230] sm:$0xff]
    %v144 = vld [vmem:[%s1 + $0x238] sm:$0xff]
    %v145 = vld [vmem:[%s1 + $0x240] sm:$0xff]
    %v146 = vld [vmem:[%s1 + $0x248] sm:$0xff]
    %v147 = vld [vmem:[%s1 + $0x250] sm:$0xff]
    %v148 = vld [vmem:[%s1 + $0x258] sm:$0xff]
    %v149 = vld [vmem:[%s1 + $0x260] sm:$0xff]
    %v150 = vld [vmem:[%s1 + $0x268] sm:$0xff]
    %v151 = vld [vmem:[%s1 + $0x270] sm:$0xff]
    %v152 = vld [vmem:[%s1 + $0x278] sm:$0xff]
    %v153 = vld [vmem:[%s1 + $0x280] sm:$0xff]
    %v154 = vld [vmem:[%s1 + $0x288] sm:$0xff]
    %v155 = vld [vmem:[%s1 + $0x290] sm:$0xff]
    %v156 = vld [vmem:[%s1 + $0x298] sm:$0xff]
    %v157 = vld [vmem:[%s1 + $0x2a0] sm:$0xff]
    %v158 = vld [vmem:[%s1 + $0x2a8] sm:$0xff]
    %v159 = vld [vmem:[%s1 + $0x2b0] sm:$0xff]
    %v160 = vld [vmem:[%s1 + $0x2b8] sm:$0xff]
    %v161 = vld [vmem:[%s1 + $0x2c0] sm:$0xff]
    %v162 = vld [vmem:[%s1 + $0x2c8] sm:$0xff]
    %v163 = vld [vmem:[%s1 + $0x2d0] sm:$0xff]
    %v164 = vld [vmem:[%s1 + $0x2d8] sm:$0xff]
    %v165 = vld [vmem:[%s1 + $0x2e0] sm:$0xff]
    %v166 = vld [vmem:[%s1 + $0x2e8] sm:$0xff]
    %v167 = vld [vmem:[%s1 + $0x2f0] sm:$0xff]
    %v168 = vld [vmem:[%s1 + $0x2f8] sm:$0xff]
    %v169 = vld [vmem:[%s1 + $0x300] sm:$0xff]
    %v170 = vld [vmem:[%s1 + $0x308] sm:$0xff]
    %v171 = vld [vmem:[%s2] sm:$0x3]
    %v173 = vlaneseq
    %v174 = vshrl.u32 %v173, 7
    %v175 = vsub.s32 0, %v174
    %v176 = vrot.slane %v171, %v175
    %v177 = vlaneseq
    %v178 = vshrl.u32 %v177, 7
    %v179 = vsub.s32 1, %v178
    %v180 = vrot.slane %v171, %v179
    %v281 = vunpack.c.l.b16 %v73
    %v282 = vunpack.c.h.b16 %v73
    %v283 = vunpack.c.l.b16 %v74
    %v284 = vunpack.c.h.b16 %v74
    %v285 = vunpack.c.l.b16 %v75
    %v286 = vunpack.c.h.b16 %v75
    %v287 = vunpack.c.l.b16 %v76
    %v288 = vunpack.c.h.b16 %v76
    %v289 = vunpack.c.l.b16 %v77
    %v290 = vunpack.c.h.b16 %v77
    %v291 = vunpack.c.l.b16 %v78
    %v292 = vunpack.c.h.b16 %v78
    %v293 = vunpack.c.l.b16 %v79
    %v294 = vunpack.c.h.b16 %v79
    %v295 = vunpack.c.l.b16 %v80
    %v296 = vunpack.c.h.b16 %v80
    %v297 = vunpack.c.l.b16 %v81
    %v298 = vunpack.c.h.b16 %v81
    %v299 = vunpack.c.l.b16 %v82
    %v300 = vunpack.c.h.b16 %v82
    %v301 = vunpack.c.l.b16 %v83
    %v302 = vunpack.c.h.b16 %v83
    %v303 = vunpack.c.l.b16 %v84
    %v304 = vunpack.c.h.b16 %v84
    %v305 = vunpack.c.l.b16 %v85
    %v306 = vunpack.c.h.b16 %v85
    %v307 = vunpack.c.l.b16 %v86
    %v308 = vunpack.c.h.b16 %v86
    %v309 = vunpack.c.l.b16 %v87
    %v310 = vunpack.c.h.b16 %v87
    %v311 = vunpack.c.l.b16 %v88
    %v312 = vunpack.c.h.b16 %v88
    %v313 = vunpack.c.l.b16 %v89
    %v314 = vunpack.c.h.b16 %v89
    %v315 = vunpack.c.l.b16 %v90
    %v316 = vunpack.c.h.b16 %v90
    %v317 = vunpack.c.l.b16 %v91
    %v318 = vunpack.c.h.b16 %v91
    %v319 = vunpack.c.l.b16 %v92
    %v320 = vunpack.c.h.b16 %v92
    %v321 = vunpack.c.l.b16 %v93
    %v322 = vunpack.c.h.b16 %v93
    %v323 = vunpack.c.l.b16 %v94
    %v324 = vunpack.c.h.b16 %v94
    %v325 = vunpack.c.l.b16 %v95
    %v326 = vunpack.c.h.b16 %v95
    %v327 = vunpack.c.l.b16 %v96
    %v328 = vunpack.c.h.b16 %v96
    %v329 = vunpack.c.l.b16 %v97
    %v330 = vunpack.c.h.b16 %v97
    %v331 = vunpack.c.l.b16 %v98
    %v332 = vunpack.c.h.b16 %v98
    %v333 = vunpack.c.l.b16 %v99
    %v334 = vunpack.c.h.b16 %v99
    %v335 = vunpack.c.l.b16 %v100
    %v336 = vunpack.c.h.b16 %v100
    %v337 = vunpack.c.l.b16 %v101
    %v338 = vunpack.c.h.b16 %v101
    %v339 = vunpack.c.l.b16 %v102
    %v340 = vunpack.c.h.b16 %v102
    %v341 = vunpack.c.l.b16 %v103
    %v342 = vunpack.c.h.b16 %v103
    %v343 = vunpack.c.l.b16 %v104
    %v344 = vunpack.c.h.b16 %v104
    %v345 = vunpack.c.l.b16 %v105
    %v346 = vunpack.c.h.b16 %v105
    %v347 = vunpack.c.l.b16 %v106
    %v348 = vunpack.c.h.b16 %v106
    %v349 = vunpack.c.l.b16 %v107
    %v350 = vunpack.c.h.b16 %v107
    %v351 = vunpack.c.l.b16 %v108
    %v352 = vunpack.c.h.b16 %v108
    %v353 = vunpack.c.l.b16 %v109
    %v354 = vunpack.c.h.b16 %v109
    %v355 = vunpack.c.l.b16 %v110
    %v356 = vunpack.c.h.b16 %v110
    %v357 = vunpack.c.l.b16 %v111
    %v358 = vunpack.c.h.b16 %v111
    %v359 = vunpack.c.l.b16 %v112
    %v360 = vunpack.c.h.b16 %v112
    %v361 = vunpack.c.l.b16 %v113
    %v362 = vunpack.c.h.b16 %v113
    %v363 = vunpack.c.l.b16 %v114
    %v364 = vunpack.c.h.b16 %v114
    %v365 = vunpack.c.l.b16 %v115
    %v366 = vunpack.c.h.b16 %v115
    %v367 = vunpack.c.l.b16 %v116
    %v368 = vunpack.c.h.b16 %v116
    %v369 = vunpack.c.l.b16 %v117
    %v370 = vunpack.c.h.b16 %v117
    %v371 = vunpack.c.l.b16 %v118
    %v372 = vunpack.c.h.b16 %v118
    %v373 = vunpack.c.l.b16 %v119
    %v374 = vunpack.c.h.b16 %v119
    %v375 = vunpack.c.l.b16 %v120
    %v376 = vunpack.c.h.b16 %v120
    %v377 = vunpack.c.l.b16 %v121
    %v378 = vunpack.c.h.b16 %v121
    %v379 = vunpack.c.l.b16 %v122
    %v380 = vunpack.c.h.b16 %v122
    %v381 = vunpack.c.l.b16 %v123
    %v382 = vunpack.c.h.b16 %v123
    %v383 = vunpack.c.l.b16 %v124
    %v384 = vunpack.c.h.b16 %v124
    %v385 = vunpack.c.l.b16 %v125
    %v386 = vunpack.c.h.b16 %v125
    %v387 = vunpack.c.l.b16 %v126
    %v388 = vunpack.c.h.b16 %v126
    %v389 = vunpack.c.l.b16 %v127
    %v390 = vunpack.c.h.b16 %v127
    %v391 = vunpack.c.l.b16 %v128
    %v392 = vunpack.c.h.b16 %v128
    %v393 = vunpack.c.l.b16 %v129
    %v394 = vunpack.c.h.b16 %v129
    %v395 = vunpack.c.l.b16 %v130
    %v396 = vunpack.c.h.b16 %v130
    %v397 = vunpack.c.l.b16 %v131
    %v398 = vunpack.c.h.b16 %v131
    %v399 = vunpack.c.l.b16 %v132
    %v400 = vunpack.c.h.b16 %v132
    %v401 = vunpack.c.l.b16 %v133
    %v402 = vunpack.c.h.b16 %v133
    %v403 = vunpack.c.l.b16 %v134
    %v404 = vunpack.c.h.b16 %v134
    %v405 = vunpack.c.l.b16 %v135
    %v406 = vunpack.c.h.b16 %v135
    %v407 = vunpack.c.l.b16 %v136
    %v408 = vunpack.c.h.b16 %v136
    %v409 = vunpack.c.l.b16 %v137
    %v410 = vunpack.c.h.b16 %v137
    %v411 = vunpack.c.l.b16 %v138
    %v412 = vunpack.c.h.b16 %v138
    %v413 = vunpack.c.l.b16 %v139
    %v414 = vunpack.c.h.b16 %v139
    %v415 = vunpack.c.l.b16 %v140
    %v416 = vunpack.c.h.b16 %v140
    %v417 = vunpack.c.l.b16 %v141
    %v418 = vunpack.c.h.b16 %v141
    %v419 = vunpack.c.l.b16 %v142
    %v420 = vunpack.c.h.b16 %v142
    %v421 = vunpack.c.l.b16 %v143
    %v422 = vunpack.c.h.b16 %v143
    %v423 = vunpack.c.l.b16 %v144
    %v424 = vunpack.c.h.b16 %v144
    %v425 = vunpack.c.l.b16 %v145
    %v426 = vunpack.c.h.b16 %v145
    %v427 = vunpack.c.l.b16 %v146
    %v428 = vunpack.c.h.b16 %v146
    %v429 = vunpack.c.l.b16 %v147
    %v430 = vunpack.c.h.b16 %v147
    %v431 = vunpack.c.l.b16 %v148
    %v432 = vunpack.c.h.b16 %v148
    %v433 = vunpack.c.l.b16 %v149
    %v434 = vunpack.c.h.b16 %v149
    %v435 = vunpack.c.l.b16 %v150
    %v436 = vunpack.c.h.b16 %v150
    %v437 = vunpack.c.l.b16 %v151
    %v438 = vunpack.c.h.b16 %v151
    %v439 = vunpack.c.l.b16 %v152
    %v440 = vunpack.c.h.b16 %v152
    %v441 = vunpack.c.l.b16 %v153
    %v442 = vunpack.c.h.b16 %v153
    %v443 = vunpack.c.l.b16 %v154
    %v444 = vunpack.c.h.b16 %v154
    %v445 = vunpack.c.l.b16 %v155
    %v446 = vunpack.c.h.b16 %v155
    %v447 = vunpack.c.l.b16 %v156
    %v448 = vunpack.c.h.b16 %v156
    %v449 = vunpack.c.l.b16 %v157
    %v450 = vunpack.c.h.b16 %v157
    %v451 = vunpack.c.l.b16 %v158
    %v452 = vunpack.c.h.b16 %v158
    %v453 = vunpack.c.l.b16 %v159
    %v454 = vunpack.c.h.b16 %v159
    %v455 = vunpack.c.l.b16 %v160
    %v456 = vunpack.c.h.b16 %v160
    %v457 = vunpack.c.l.b16 %v161
    %v458 = vunpack.c.h.b16 %v161
    %v459 = vunpack.c.l.b16 %v162
    %v460 = vunpack.c.h.b16 %v162
    %v461 = vunpack.c.l.b16 %v163
    %v462 = vunpack.c.h.b16 %v163
    %v463 = vunpack.c.l.b16 %v164
    %v464 = vunpack.c.h.b16 %v164
    %v465 = vunpack.c.l.b16 %v165
    %v466 = vunpack.c.h.b16 %v165
    %v467 = vunpack.c.l.b16 %v166
    %v468 = vunpack.c.h.b16 %v166
    %v469 = vunpack.c.l.b16 %v167
    %v470 = vunpack.c.h.b16 %v167
    %v471 = vunpack.c.l.b16 %v168
    %v472 = vunpack.c.h.b16 %v168
    %v473 = vunpack.c.l.b16 %v169
    %v474 = vunpack.c.h.b16 %v169
    %v475 = vunpack.c.l.b16 %v170
    %v476 = vunpack.c.h.b16 %v170
    %v477 = vpack.c.b16 %v283, %v281
    %v478 = vpack.c.b16 %v284, %v282
    %v479 = vpack.c.b16 %v287, %v285
    %v480 = vpack.c.b16 %v288, %v286
    %v481 = vpack.c.b16 %v291, %v289
    %v482 = vpack.c.b16 %v292, %v290
    %v483 = vpack.c.b16 %v295, %v293
    %v484 = vpack.c.b16 %v296, %v294
    %v485 = vpack.c.b16 %v299, %v297
    %v486 = vpack.c.b16 %v300, %v298
    %v487 = vpack.c.b16 %v303, %v301
    %v488 = vpack.c.b16 %v304, %v302
    %v489 = vpack.c.b16 %v307, %v305
    %v490 = vpack.c.b16 %v308, %v306
    %v491 = vpack.c.b16 %v311, %v309
    %v492 = vpack.c.b16 %v312, %v310
    %v493 = vpack.c.b16 %v315, %v313
    %v494 = vpack.c.b16 %v316, %v314
    %v495 = vpack.c.b16 %v319, %v317
    %v496 = vpack.c.b16 %v320, %v318
    %v497 = vpack.c.b16 %v323, %v321
    %v498 = vpack.c.b16 %v324, %v322
    %v499 = vpack.c.b16 %v327, %v325
    %v500 = vpack.c.b16 %v328, %v326
    %v501 = vpack.c.b16 %v331, %v329
    %v502 = vpack.c.b16 %v332, %v330
    %v503 = vpack.c.b16 %v335, %v333
    %v504 = vpack.c.b16 %v336, %v334
    %v505 = vpack.c.b16 %v339, %v337
    %v506 = vpack.c.b16 %v340, %v338
    %v507 = vpack.c.b16 %v343, %v341
    %v508 = vpack.c.b16 %v344, %v342
    %v509 = vpack.c.b16 %v347, %v345
    %v510 = vpack.c.b16 %v348, %v346
    %v511 = vpack.c.b16 %v351, %v349
    %v512 = vpack.c.b16 %v352, %v350
    %v513 = vpack.c.b16 %v355, %v353
    %v514 = vpack.c.b16 %v356, %v354
    %v515 = vpack.c.b16 %v359, %v357
    %v516 = vpack.c.b16 %v360, %v358
    %v517 = vpack.c.b16 %v363, %v361
    %v518 = vpack.c.b16 %v364, %v362
    %v519 = vpack.c.b16 %v367, %v365
    %v520 = vpack.c.b16 %v368, %v366
    %v521 = vpack.c.b16 %v371, %v369
    %v522 = vpack.c.b16 %v372, %v370
    %v523 = vpack.c.b16 %v375, %v373
    %v524 = vpack.c.b16 %v376, %v374
    %v525 = vpack.c.b16 %v379, %v377
    %v526 = vpack.c.b16 %v380, %v378
    %v527 = vpack.c.b16 %v383, %v381
    %v528 = vpack.c.b16 %v384, %v382
    %v529 = vpack.c.b16 %v387, %v385
    %v530 = vpack.c.b16 %v388, %v386
    %v531 = vpack.c.b16 %v391, %v389
    %v532 = vpack.c.b16 %v392, %v390
    %v533 = vpack.c.b16 %v395, %v393
    %v534 = vpack.c.b16 %v396, %v394
    %v535 = vpack.c.b16 %v399, %v397
    %v536 = vpack.c.b16 %v400, %v398
    %v537 = vpack.c.b16 %v403, %v401
    %v538 = vpack.c.b16 %v404, %v402
    %v539 = vpack.c.b16 %v407, %v405
    %v540 = vpack.c.b16 %v408, %v406
    %v541 = vpack.c.b16 %v411, %v409
    %v542 = vpack.c.b16 %v412, %v410
    %v543 = vpack.c.b16 %v415, %v413
    %v544 = vpack.c.b16 %v416, %v414
    %v545 = vpack.c.b16 %v419, %v417
    %v546 = vpack.c.b16 %v420, %v418
    %v547 = vpack.c.b16 %v423, %v421
    %v548 = vpack.c.b16 %v424, %v422
    %v549 = vpack.c.b16 %v427, %v425
    %v550 = vpack.c.b16 %v428, %v426
    %v551 = vpack.c.b16 %v431, %v429
    %v552 = vpack.c.b16 %v432, %v430
    %v553 = vpack.c.b16 %v435, %v433
    %v554 = vpack.c.b16 %v436, %v434
    %v555 = vpack.c.b16 %v439, %v437
    %v556 = vpack.c.b16 %v440, %v438
    %v557 = vpack.c.b16 %v443, %v441
    %v558 = vpack.c.b16 %v444, %v442
    %v559 = vpack.c.b16 %v447, %v445
    %v560 = vpack.c.b16 %v448, %v446
    %v561 = vpack.c.b16 %v451, %v449
    %v562 = vpack.c.b16 %v452, %v450
    %v563 = vpack.c.b16 %v455, %v453
    %v564 = vpack.c.b16 %v456, %v454
    %v565 = vpack.c.b16 %v459, %v457
    %v566 = vpack.c.b16 %v460, %v458
    %v567 = vpack.c.b16 %v463, %v461
    %v568 = vpack.c.b16 %v464, %v462
    %v569 = vpack.c.b16 %v467, %v465
    %v570 = vpack.c.b16 %v468, %v466
    %v571 = vpack.c.b16 %v471, %v469
    %v572 = vpack.c.b16 %v472, %v470
    %v573 = vpack.c.b16 %v475, %v473
    %v574 = vpack.c.b16 %v476, %v474
    %vm673 = vcmask 130048
    %v675 = vsel %vm673, %v72, 0
    %677 = vmatprep.subr.bf16.mxu0 %v492
    %678 = vmatpush1.bf16.msra.mxu0 %v491
    %679 = vmatprep.subr.bf16.mxu0 %v490
    %680 = vmatpush1.bf16.msra.mxu0 %v489
    %681 = vmatprep.subr.bf16.mxu0 %v488
    %682 = vmatpush1.bf16.msra.mxu0 %v487
    %683 = vmatprep.subr.bf16.mxu0 %v486
    %684 = vmatpush1.bf16.msra.mxu0 %v485
    %685 = vmatprep.subr.bf16.mxu0 %v484
    %686 = vmatpush1.bf16.msra.mxu0 %v483
    %687 = vmatprep.subr.bf16.mxu0 %v482
    %688 = vmatpush1.bf16.msra.mxu0 %v481
    %689 = vmatprep.subr.bf16.mxu0 %v480
    %690 = vmatpush1.bf16.msra.mxu0 %v479
    %691 = vmatprep.subr.bf16.mxu0 %v478
    %692 = vmatpush1.bf16.msra.mxu0 %v477
    %693 = vmatprep.subr.bf16.mxu0 %v508
    %694 = vmatpush2.bf16.msra.mxu0 %v507
    %695 = vmatprep.subr.bf16.mxu0 %v506
    %696 = vmatpush2.bf16.msra.mxu0 %v505
    %697 = vmatprep.subr.bf16.mxu0 %v504
    %698 = vmatpush2.bf16.msra.mxu0 %v503
    %699 = vmatprep.subr.bf16.mxu0 %v502
    %700 = vmatpush2.bf16.msra.mxu0 %v501
    %701 = vmatprep.subr.bf16.mxu0 %v500
    %702 = vmatpush2.bf16.msra.mxu0 %v499
    %703 = vmatprep.subr.bf16.mxu0 %v498
    %704 = vmatpush2.bf16.msra.mxu0 %v497
    %705 = vmatprep.subr.bf16.mxu0 %v496
    %706 = vmatpush2.bf16.msra.mxu0 %v495
    %707 = vmatprep.subr.bf16.mxu0 %v494
    %708 = vmatpush2.bf16.msra.mxu0 %v493
    %709 = vmatprep.mubr.bf16.mxu0 %v67
    %710 = vmatmul.mubr.bf16.gmra.mxu0 %v66
    %v711 = vpop.f32.mrf.mxu0
    %v712 = vadd.f32 %v176, %v711
    %v713 = vpop.f32.mrf.mxu0
    %v714 = vadd.f32 %v180, %v713
    %v715 = vpop.f32.mrf.mxu0
    %v716 = vpop.f32.mrf.mxu0
    %717 = vdwg.mxu0
    %718 = vmatprep.subr.bf16.mxu0 %v524
    %719 = vmatpush1.bf16.msra.mxu0 %v523
    %720 = vmatprep.subr.bf16.mxu0 %v522
    %721 = vmatpush1.bf16.msra.mxu0 %v521
    %722 = vmatprep.subr.bf16.mxu0 %v520
    %723 = vmatpush1.bf16.msra.mxu0 %v519
    %724 = vmatprep.subr.bf16.mxu0 %v518
    %725 = vmatpush1.bf16.msra.mxu0 %v517
    %726 = vmatprep.subr.bf16.mxu0 %v516
    %727 = vmatpush1.bf16.msra.mxu0 %v515
    %728 = vmatprep.subr.bf16.mxu0 %v514
    %729 = vmatpush1.bf16.msra.mxu0 %v513
    %730 = vmatprep.subr.bf16.mxu0 %v512
    %731 = vmatpush1.bf16.msra.mxu0 %v511
    %732 = vmatprep.subr.bf16.mxu0 %v510
    %733 = vmatpush1.bf16.msra.mxu0 %v509
    %734 = vmatprep.subr.bf16.mxu0 %v540
    %735 = vmatpush2.bf16.msra.mxu0 %v539
    %736 = vmatprep.subr.bf16.mxu0 %v538
    %737 = vmatpush2.bf16.msra.mxu0 %v537
    %738 = vmatprep.subr.bf16.mxu0 %v536
    %739 = vmatpush2.bf16.msra.mxu0 %v535
    %740 = vmatprep.subr.bf16.mxu0 %v534
    %741 = vmatpush2.bf16.msra.mxu0 %v533
    %742 = vmatprep.subr.bf16.mxu0 %v532
    %743 = vmatpush2.bf16.msra.mxu0 %v531
    %744 = vmatprep.subr.bf16.mxu0 %v530
    %745 = vmatpush2.bf16.msra.mxu0 %v529
    %746 = vmatprep.subr.bf16.mxu0 %v528
    %747 = vmatpush2.bf16.msra.mxu0 %v527
    %748 = vmatprep.subr.bf16.mxu0 %v526
    %749 = vmatpush2.bf16.msra.mxu0 %v525
    %750 = vmatprep.mubr.bf16.mxu0 %v69
    %751 = vmatmul.mubr.bf16.gmra.mxu0 %v68
    %v752 = vpop.f32.mrf.mxu0
    %v753 = vadd.f32 %v712, %v752
    %v754 = vpop.f32.mrf.mxu0
    %v755 = vadd.f32 %v714, %v754
    %v756 = vpop.f32.mrf.mxu0
    %v757 = vpop.f32.mrf.mxu0
    %758 = vdwg.mxu0
    %759 = vmatprep.subr.bf16.mxu0 %v556
    %760 = vmatpush1.bf16.msra.mxu0 %v555
    %761 = vmatprep.subr.bf16.mxu0 %v554
    %762 = vmatpush1.bf16.msra.mxu0 %v553
    %763 = vmatprep.subr.bf16.mxu0 %v552
    %764 = vmatpush1.bf16.msra.mxu0 %v551
    %765 = vmatprep.subr.bf16.mxu0 %v550
    %766 = vmatpush1.bf16.msra.mxu0 %v549
    %767 = vmatprep.subr.bf16.mxu0 %v548
    %768 = vmatpush1.bf16.msra.mxu0 %v547
    %769 = vmatprep.subr.bf16.mxu0 %v546
    %770 = vmatpush1.bf16.msra.mxu0 %v545
    %771 = vmatprep.subr.bf16.mxu0 %v544
    %772 = vmatpush1.bf16.msra.mxu0 %v543
    %773 = vmatprep.subr.bf16.mxu0 %v542
    %774 = vmatpush1.bf16.msra.mxu0 %v541
    %775 = vmatprep.subr.bf16.mxu0 %v572
    %776 = vmatpush2.bf16.msra.mxu0 %v571
    %777 = vmatprep.subr.bf16.mxu0 %v570
    %778 = vmatpush2.bf16.msra.mxu0 %v569
    %779 = vmatprep.subr.bf16.mxu0 %v568
    %780 = vmatpush2.bf16.msra.mxu0 %v567
    %781 = vmatprep.subr.bf16.mxu0 %v566
    %782 = vmatpush2.bf16.msra.mxu0 %v565
    %783 = vmatprep.subr.bf16.mxu0 %v564
    %784 = vmatpush2.bf16.msra.mxu0 %v563
    %785 = vmatprep.subr.bf16.mxu0 %v562
    %786 = vmatpush2.bf16.msra.mxu0 %v561
    %787 = vmatprep.subr.bf16.mxu0 %v560
    %788 = vmatpush2.bf16.msra.mxu0 %v559
    %789 = vmatprep.subr.bf16.mxu0 %v558
    %790 = vmatpush2.bf16.msra.mxu0 %v557
    %791 = vmatprep.mubr.bf16.mxu0 %v71
    %792 = vmatmul.mubr.bf16.gmra.mxu0 %v70
    %v793 = vpop.f32.mrf.mxu0
    %v794 = vadd.f32 %v753, %v793
    %v795 = vpop.f32.mrf.mxu0
    %v796 = vadd.f32 %v755, %v795
    %v797 = vpop.f32.mrf.mxu0
    %v798 = vpop.f32.mrf.mxu0
    %799 = vdwg.mxu0
    %800 = vmatprep.subr.bf16.mxu0 0
    %801 = vmatpush1.bf16.msra.mxu0 0
    %802 = vmatprep.subr.bf16.mxu0 0
    %803 = vmatpush1.bf16.msra.mxu0 0
    %804 = vmatprep.subr.bf16.mxu0 0
    %805 = vmatpush1.bf16.msra.mxu0 0
    %806 = vmatprep.subr.bf16.mxu0 0
    %807 = vmatpush1.bf16.msra.mxu0 0
    %808 = vmatprep.subr.bf16.mxu0 0
    %809 = vmatpush1.bf16.msra.mxu0 0
    %810 = vmatprep.subr.bf16.mxu0 0
    %811 = vmatpush1.bf16.msra.mxu0 0
    %812 = vmatprep.subr.bf16.mxu0 0
    %813 = vmatpush1.bf16.msra.mxu0 0
    %814 = vmatprep.subr.bf16.mxu0 %v574
    %815 = vmatpush1.bf16.msra.mxu0 %v573
    %816 = vmatprep.subr.bf16.mxu0 0
    %817 = vmatpush2.bf16.msra.mxu0 0
    %818 = vmatprep.subr.bf16.mxu0 0
    %819 = vmatpush2.bf16.msra.mxu0 0
    %820 = vmatprep.subr.bf16.mxu0 0
    %821 = vmatpush2.bf16.msra.mxu0 0
    %822 = vmatprep.subr.bf16.mxu0 0
    %823 = vmatpush2.bf16.msra.mxu0 0
    %824 = vmatprep.subr.bf16.mxu0 0
    %825 = vmatpush2.bf16.msra.mxu0 0
    %826 = vmatprep.subr.bf16.mxu0 0
    %827 = vmatpush2.bf16.msra.mxu0 0
    %828 = vmatprep.subr.bf16.mxu0 0
    %829 = vmatpush2.bf16.msra.mxu0 0
    %830 = vmatprep.subr.bf16.mxu0 0
    %831 = vmatpush2.bf16.msra.mxu0 0
    %832 = vmatprep.mubr.bf16.mxu0 0
    %833 = vmatmul.mubr.bf16.gmra.mxu0 %v675
    %v834 = vpop.f32.mrf.mxu0
    %v835 = vadd.f32 %v794, %v834
    %v836 = vpop.f32.mrf.mxu0
    %v837 = vadd.f32 %v796, %v836
    %v838 = vpop.f32.mrf.mxu0
    %v839 = vpop.f32.mrf.mxu0
    %840 = vdwg.mxu0
    %v841 = vmul.f32 %v835, 0.5
    %v842 = vmul.f32 %v837, 0.5
    %v843 = vtanh.pop %v841
    %v844 = vtanh.pop %v842
    %v845 = vmul.f32 %v843, 0.5
    %v846 = vmul.f32 %v844, 0.5
    %v847 = vadd.f32 %v845, 0.5
    %v848 = vadd.f32 %v846, 0.5
    %v849 = vpack.c.bf16 %v847, %v847
    %v850 = vpack.c.bf16 %v848, %v848
    %v851 = vld [vmem:[%s3] sm:$0xf]
    %v852 = vld [vmem:[%s3 + $0x4] sm:$0xf]
    %v853 = vld [vmem:[%s3 + $0x8] sm:$0xf]
    %v854 = vld [vmem:[%s3 + $0xc] sm:$0xf]
    %v855 = vld [vmem:[%s3 + $0x10] sm:$0xf]
    %v856 = vld [vmem:[%s3 + $0x14] sm:$0xf]
    %v857 = vld [vmem:[%s3 + $0x18] sm:$0xf]
    %v858 = vld [vmem:[%s3 + $0x1c] sm:$0xf]
    %v859 = vld [vmem:[%s3 + $0x20] sm:$0xf]
    %v860 = vld [vmem:[%s3 + $0x24] sm:$0xf]
    %v861 = vld [vmem:[%s3 + $0x28] sm:$0xf]
    %v862 = vld [vmem:[%s3 + $0x2c] sm:$0xf]
    %v863 = vld [vmem:[%s3 + $0x30] sm:$0xf]
    %v864 = vld [vmem:[%s3 + $0x34] sm:$0xf]
    %v865 = vld [vmem:[%s3 + $0x38] sm:$0xf]
    %v866 = vld [vmem:[%s3 + $0x3c] sm:$0xf]
    %v867 = vld [vmem:[%s3 + $0x40] sm:$0xf]
    %v868 = vld [vmem:[%s3 + $0x44] sm:$0xf]
    %v869 = vld [vmem:[%s3 + $0x48] sm:$0xf]
    %v870 = vld [vmem:[%s3 + $0x4c] sm:$0xf]
    %v871 = vld [vmem:[%s3 + $0x50] sm:$0xf]
    %v872 = vld [vmem:[%s3 + $0x54] sm:$0xf]
    %v873 = vld [vmem:[%s3 + $0x58] sm:$0xf]
    %v874 = vld [vmem:[%s3 + $0x5c] sm:$0xf]
    %v875 = vld [vmem:[%s3 + $0x60] sm:$0xf]
    %v876 = vld [vmem:[%s3 + $0x64] sm:$0xf]
    %v877 = vld [vmem:[%s3 + $0x68] sm:$0xf]
    %v878 = vld [vmem:[%s3 + $0x6c] sm:$0xf]
    %v879 = vld [vmem:[%s3 + $0x70] sm:$0xf]
    %v880 = vld [vmem:[%s3 + $0x74] sm:$0xf]
    %v881 = vld [vmem:[%s3 + $0x78] sm:$0xf]
    %v882 = vld [vmem:[%s3 + $0x7c] sm:$0xf]
    %v883 = vld [vmem:[%s4] sm:$0x1]
    %v885 = vlaneseq
    %v886 = vshrl.u32 %v885, 7
    %v887 = vsub.s32 0, %v886
    %v888 = vrot.slane %v883, %v887
    %v922 = vunpack.c.l.b16 %v851
    %v923 = vunpack.c.l.b16 %v852
    %v924 = vunpack.c.l.b16 %v853
    %v925 = vunpack.c.l.b16 %v854
    %v926 = vunpack.c.l.b16 %v855
    %v927 = vunpack.c.l.b16 %v856
    %v928 = vunpack.c.l.b16 %v857
    %v929 = vunpack.c.l.b16 %v858
    %v930 = vunpack.c.l.b16 %v859
    %v931 = vunpack.c.l.b16 %v860
    %v932 = vunpack.c.l.b16 %v861
    %v933 = vunpack.c.l.b16 %v862
    %v934 = vunpack.c.l.b16 %v863
    %v935 = vunpack.c.l.b16 %v864
    %v936 = vunpack.c.l.b16 %v865
    %v937 = vunpack.c.l.b16 %v866
    %v938 = vunpack.c.l.b16 %v867
    %v939 = vunpack.c.l.b16 %v868
    %v940 = vunpack.c.l.b16 %v869
    %v941 = vunpack.c.l.b16 %v870
    %v942 = vunpack.c.l.b16 %v871
    %v943 = vunpack.c.l.b16 %v872
    %v944 = vunpack.c.l.b16 %v873
    %v945 = vunpack.c.l.b16 %v874
    %v946 = vunpack.c.l.b16 %v875
    %v947 = vunpack.c.l.b16 %v876
    %v948 = vunpack.c.l.b16 %v877
    %v949 = vunpack.c.l.b16 %v878
    %v950 = vunpack.c.l.b16 %v879
    %v951 = vunpack.c.l.b16 %v880
    %v952 = vunpack.c.l.b16 %v881
    %v953 = vunpack.c.l.b16 %v882
    %v954 = vpack.c.b16 %v923, %v922
    %v955 = vpack.c.b16 %v925, %v924
    %v956 = vpack.c.b16 %v927, %v926
    %v957 = vpack.c.b16 %v929, %v928
    %v958 = vpack.c.b16 %v931, %v930
    %v959 = vpack.c.b16 %v933, %v932
    %v960 = vpack.c.b16 %v935, %v934
    %v961 = vpack.c.b16 %v937, %v936
    %v962 = vpack.c.b16 %v939, %v938
    %v963 = vpack.c.b16 %v941, %v940
    %v964 = vpack.c.b16 %v943, %v942
    %v965 = vpack.c.b16 %v945, %v944
    %v966 = vpack.c.b16 %v947, %v946
    %v967 = vpack.c.b16 %v949, %v948
    %v968 = vpack.c.b16 %v951, %v950
    %v969 = vpack.c.b16 %v953, %v952
    %986 = vmatprep.subr.bf16.mxu0 0
    %987 = vmatpush1.bf16.msra.mxu0 %v961
    %988 = vmatprep.subr.bf16.mxu0 0
    %989 = vmatpush1.bf16.msra.mxu0 %v960
    %990 = vmatprep.subr.bf16.mxu0 0
    %991 = vmatpush1.bf16.msra.mxu0 %v959
    %992 = vmatprep.subr.bf16.mxu0 0
    %993 = vmatpush1.bf16.msra.mxu0 %v958
    %994 = vmatprep.subr.bf16.mxu0 0
    %995 = vmatpush1.bf16.msra.mxu0 %v957
    %996 = vmatprep.subr.bf16.mxu0 0
    %997 = vmatpush1.bf16.msra.mxu0 %v956
    %998 = vmatprep.subr.bf16.mxu0 0
    %999 = vmatpush1.bf16.msra.mxu0 %v955
    %1000 = vmatprep.subr.bf16.mxu0 0
    %1001 = vmatpush1.bf16.msra.mxu0 %v954
    %1002 = vmatprep.subr.bf16.mxu0 0
    %1003 = vmatpush2.bf16.msra.mxu0 %v969
    %1004 = vmatprep.subr.bf16.mxu0 0
    %1005 = vmatpush2.bf16.msra.mxu0 %v968
    %1006 = vmatprep.subr.bf16.mxu0 0
    %1007 = vmatpush2.bf16.msra.mxu0 %v967
    %1008 = vmatprep.subr.bf16.mxu0 0
    %1009 = vmatpush2.bf16.msra.mxu0 %v966
    %1010 = vmatprep.subr.bf16.mxu0 0
    %1011 = vmatpush2.bf16.msra.mxu0 %v965
    %1012 = vmatprep.subr.bf16.mxu0 0
    %1013 = vmatpush2.bf16.msra.mxu0 %v964
    %1014 = vmatprep.subr.bf16.mxu0 0
    %1015 = vmatpush2.bf16.msra.mxu0 %v963
    %1016 = vmatprep.subr.bf16.mxu0 0
    %1017 = vmatpush2.bf16.msra.mxu0 %v962
    %1018 = vmatprep.mubr.bf16.mxu0 %v850
    %1019 = vmatmul.mubr.bf16.gmra.mxu0 %v849
    %v1020 = vpop.f32.mrf.mxu0
    %v1021 = vadd.f32 %v888, %v1020
    %v1022 = vpop.f32.mrf.mxu0
    %v1023 = vpop.f32.mrf.mxu0
    %v1024 = vpop.f32.mrf.mxu0
    %1025 = vdwg.mxu0
    %vm1026 = vcmask 1041408
    %v1027 = vsel %vm1026, %v1021, -inf
    %1028 = vmax.xlane.f32.xlu0 %v1027
    %v1029 = vpop.xlane.xlu0 %1028
    %v1030 = vsub.f32 %v1021, %v1029
    %v1031 = vmul.f32 %v1030, 1.442695
    %v1032 = vpow.pop %v1031
    %v1033 = vsel %vm1026, %v1032, 0.0
    %1034 = vadd.xlane.f32.xlu0 %v1033
    %v1035 = vpop.xlane.xlu0 %1034
    %v1036 = vrcp.pop %v1035
    %v1037 = vmul.f32 %v1032, %v1036
    %1038 = vst [vmem:[#allocation2] sm:$0x3] %v1037
    // Predicated region
    $region22: #{network_forward.1} parent=1 // pred_check
      _
    $region23: #{network_forward.1} parent=1 // pred_check_branch
      %1040 = sbr.rel (0) target = $region25
    $region24: #{network_forward.1} parent=1 // pred_region
      %s1042 = ssub.s32 32, 32
      %1043 = vsyncadd [#allocation3], %s1042
      %s1045 = sshll.u32 [#allocation2], 4
      %s1046 = int_to_ptr.vmem [resolvable:$true] %s1045
      %1048 = dma.vmem_to_hbm [thread:$0]  %s1046, 32, %s5, [#allocation3]
    $region25: #{network_forward.1} parent=1 // pred_fallthru
      _
    // Predicated region
    $region26: #{network_forward.1} parent=1 // pred_check
      _
    $region27: #{network_forward.1} parent=1 // pred_check_branch
      %1050 = sbr.rel (0) target = $region29
    $region28: #{network_forward.1} parent=1 // pred_region
      %1051 = dma.done [#allocation3], 32
    $region29: #{network_forward.1} parent=1 // pred_fallthru
      _
    %1052 = vsyncpa [#allocation3], 1

</llo_original>
